<compile_context>
chip_gen: v7x
topology: tpu7x:2x2x1
jax: 0.10.0
libtpu: 0.0.40
codegen_flags: <defaults>
</compile_context>

<pallas_src>
import functools

import jax
import jax.numpy as jnp
from jax.experimental import pallas as pl
from jax.experimental.pallas import tpu as pltpu

MASK_FACTOR = 10.0  # OnlyAllowA(factor=10)


def _kernel(idx_ref, tpre_ref, whead_ref, toff_ref, out_ref):
    """Per-tile fused forward.

    idx_ref  : (1, TL)  int32   base index per position (0 == 'A')
    tpre_ref : (C, 4)   f32     folded pre-ReLU activations, column b = base b
    whead_ref: (4, C)   f32     fused output head (nad | branch), transposed
    toff_ref : (4, 4)   f32     per-base output offsets (out-channel x base):
                                rows 0:3 = residue + biases, row 3 = branch
                                bias + OnlyAllowA additive mask
    out_ref  : (4, TL)  f32     fused NCL output tile (lane-dense stores)
    """
    idx = idx_ref[...]                                    # (1, TL)
    tpre = tpre_ref[...]                                  # (C, 4)
    toff = toff_ref[...]                                  # (4, 4)

    # 4-way per-lane select of the pre-activation column for each base (VPU).
    pre = jnp.where(idx == 0, tpre[:, 0:1],
          jnp.where(idx == 1, tpre[:, 1:2],
          jnp.where(idx == 2, tpre[:, 2:3], tpre[:, 3:4])))        # (C, TL)
    h = jnp.maximum(pre, 0.0)                                      # ReLU

    # Fused output head: (4, C) @ (C, TL) -> (4, TL), f32 accumulation.
    out = jnp.dot(whead_ref[...], h, preferred_element_type=jnp.float32)

    # Per-base offsets: residue + biases (channels 0:3) and branch bias +
    # OnlyAllowA mask (channel 3).
    off = jnp.where(idx == 0, toff[:, 0:1],
          jnp.where(idx == 1, toff[:, 1:2],
          jnp.where(idx == 2, toff[:, 2:3], toff[:, 3:4])))        # (4, TL)

    out_ref[...] = out + off


@functools.partial(jax.jit, static_argnames=("cl", "tile_l"))
def splicepoint_branch_site_predictor(base_idx, params, *, cl, tile_l=4096):
    """base_idx: (B, L) int in [0, 4), 0 == 'A'.  Returns (B, L - cl, 4) f32."""
    B, L = base_idx.shape
    assert cl % 2 == 0, "cl must be even"
    assert tile_l % 128 == 0, "tile_l must be a multiple of 128 (lane width)"
    (wsp, bsp, wres, bres, wup, bup, wf1, bf1, wf2n, bf2n, wf2b, bf2b) = params
    C = wup.shape[1]

    # ---- exact algebraic folding (tiny matrices, done once per call) ------
    w_pre = wsp @ wup @ wf1                                   # (4, C)
    b_pre = (bsp @ wup + bup) @ wf1 + bf1                     # (1, C)
    tpre_t = (w_pre + b_pre).T                                # (C, 4)
    whead_t = jnp.concatenate([wf2n, wf2b], axis=1).T         # (4, C)
    off_nad = wres + bres + bf2n                              # (4, 3)
    base_is_a = (jnp.arange(4) == 0)[:, None]                 # (4, 1)
    off_br = bf2b + jnp.where(base_is_a, 0.0, -MASK_FACTOR)   # (4, 1)
    toff_t = jnp.concatenate([off_nad, off_br], axis=1).T     # (4 out, 4 base)

    # ---- crop (cl//2 each side) + pad the int32 index input ---------------
    L_out = L - cl
    idx_c = base_idx[:, cl // 2: L - cl // 2].astype(jnp.int32)
    pad = (-L_out) % tile_l
    L_pad = L_out + pad
    if pad:
        idx_c = jnp.pad(idx_c, ((0, 0), (0, pad)))            # pad with base A
    idx_c = idx_c.reshape(B, 1, L_pad)

    grid = (B, L_pad // tile_l)
    out_ncl = pl.pallas_call(
        _kernel,
        out_shape=jax.ShapeDtypeStruct((B, 4, L_pad), jnp.float32),
        grid_spec=pltpu.PrefetchScalarGridSpec(
            num_scalar_prefetch=0,
            grid=grid,
            in_specs=[
                pl.BlockSpec((None, 1, tile_l), lambda b, l: (b, 0, l)),
                pl.BlockSpec((C, 4), lambda b, l: (0, 0)),
                pl.BlockSpec((4, C), lambda b, l: (0, 0)),
                pl.BlockSpec((4, 4), lambda b, l: (0, 0)),
            ],
            out_specs=pl.BlockSpec((None, 4, tile_l), lambda b, l: (b, 0, l)),
        ),
        compiler_params=pltpu.CompilerParams(
            dimension_semantics=("parallel", "parallel")),
    )(idx_c, tpre_t, whead_t, toff_t)

    if pad:
        out_ncl = out_ncl[:, :, :L_out]
    # One transpose back to NLC to match the PyTorch module's output layout.
    return jnp.transpose(out_ncl, (0, 2, 1))                  # (B, L_out, 4)


def reference_jax(x_onehot, params, *, cl):
    """Pure-JAX reference of the unfolded forward pass (for sanity check)."""
    (wsp, bsp, wres, bres, wup, bup, wf1, bf1, wf2n, bf2n, wf2b, bf2b) = params
    sp = x_onehot @ wsp + bsp
    residue = x_onehot @ wres + bres
    up = sp @ wup + bup
    h = jnp.maximum(up @ wf1 + bf1, 0.0)
    nad = h @ wf2n + bf2n + residue
    br = h @ wf2b + bf2b + (1.0 - x_onehot[:, :, 0:1]) * (-MASK_FACTOR)
    out = jnp.concatenate([nad, br], axis=-1)
    L = x_onehot.shape[1]
    return out[:, cl // 2: L - cl // 2]


def init_params(key, channels):
    keys = jax.random.split(key, 6)

    def dense(k, fan_in, fan_out):
        w = jax.random.normal(k, (fan_in, fan_out), jnp.float32) / jnp.sqrt(fan_in)
        b = jnp.zeros((1, fan_out), jnp.float32)
        return w, b

    wsp, bsp = dense(keys[0], 4, 2)
    wres, bres = dense(keys[1], 4, 3)
    wup, bup = dense(keys[2], 2, channels)
    wf1, bf1 = dense(keys[3], channels, channels)
    wf2n, bf2n = dense(keys[4], channels, 3)
    wf2b, bf2b = dense(keys[5], channels, 1)
    return (wsp, bsp, wres, bres, wup, bup, wf1, bf1, wf2n, bf2n, wf2b, bf2b)


if __name__ == "__main__":
    B, L, CHANNELS, CL = 2, 320, 32, 64
    TILE_L = 128  # small demo shapes; production default is 4096

    key = jax.random.PRNGKey(0)
    k_x, k_p = jax.random.split(key)

    # base indices (B, L); index 0 corresponds to base "A"
    base_idx = jax.random.randint(k_x, (B, L), 0, 4, dtype=jnp.int32)
    params = init_params(k_p, CHANNELS)

    out = splicepoint_branch_site_predictor(base_idx, params, cl=CL, tile_l=TILE_L)
    out = jax.block_until_ready(out)

    x_onehot = jax.nn.one_hot(base_idx, 4, dtype=jnp.float32)
    ref = reference_jax(x_onehot, params, cl=CL)

    assert out.shape == (B, L - CL, 4), out.shape
    assert jnp.allclose(out, ref, atol=1e-3, rtol=1e-3), \
        f"mismatch vs reference, max abs err {float(jnp.max(jnp.abs(out - ref)))}"

    print("KERNEL_OK")
</pallas_src>

<mosaic_0001>
module attributes {stable_mosaic.version = 11 : i64} {
  func.func @_kernel(%arg0: i32, %arg1: i32, %arg2: memref<1x1x128xi32, #tpu.memory_space<vmem>>, %arg3: memref<32x4xf32, #tpu.memory_space<vmem>>, %arg4: memref<4x32xf32, #tpu.memory_space<vmem>>, %arg5: memref<4x4xf32, #tpu.memory_space<vmem>>, %arg6: memref<1x4x128xf32, #tpu.memory_space<vmem>>) attributes {dimension_semantics = [#tpu.dimension_semantics<parallel>, #tpu.dimension_semantics<parallel>], iteration_bounds = array<i64: 2, 2>, scalar_prefetch = 0 : i64, scratch_operands = 0 : i64, tpu.core_type = #tpu.core_type<tc>, window_params = [{transform_indices = @transform_0, window_bounds = array<i64: 1, 1, 128>}, {pipeline_mode = #tpu.pipeline_mode<synchronous>, transform_indices = @transform_1, window_bounds = array<i64: 32, 4>}, {pipeline_mode = #tpu.pipeline_mode<synchronous>, transform_indices = @transform_2, window_bounds = array<i64: 4, 32>}, {pipeline_mode = #tpu.pipeline_mode<synchronous>, transform_indices = @transform_3, window_bounds = array<i64: 4, 4>}, {transform_indices = @transform_4, window_bounds = array<i64: 1, 4, 128>}]} {
    %c0 = arith.constant 0 : index
    %c0_0 = arith.constant 0 : index
    %c0_1 = arith.constant 0 : index
    %0 = vector.load %arg2[%c0, %c0_0, %c0_1] : memref<1x1x128xi32, #tpu.memory_space<vmem>>, vector<1x1x128xi32>
    %1 = vector.shape_cast %0 : vector<1x1x128xi32> to vector<1x128xi32>
    %c0_2 = arith.constant 0 : index
    %c0_3 = arith.constant 0 : index
    %2 = vector.load %arg3[%c0_2, %c0_3] : memref<32x4xf32, #tpu.memory_space<vmem>>, vector<32x4xf32>
    %c0_4 = arith.constant 0 : index
    %c0_5 = arith.constant 0 : index
    %3 = vector.load %arg5[%c0_4, %c0_5] : memref<4x4xf32, #tpu.memory_space<vmem>>, vector<4x4xf32>
    %c0_i32 = arith.constant 0 : i32
    %4 = vector.broadcast %c0_i32 : i32 to vector<1x128xi32>
    %5 = arith.cmpi eq, %1, %4 : vector<1x128xi32>
    %6 = vector.extract_strided_slice %2 {offsets = [0, 0], sizes = [32, 1], strides = [1, 1]} : vector<32x4xf32> to vector<32x1xf32>
    %c1_i32 = arith.constant 1 : i32
    %7 = vector.broadcast %c1_i32 : i32 to vector<1x128xi32>
    %8 = arith.cmpi eq, %1, %7 : vector<1x128xi32>
    %9 = vector.extract_strided_slice %2 {offsets = [0, 1], sizes = [32, 1], strides = [1, 1]} : vector<32x4xf32> to vector<32x1xf32>
    %c2_i32 = arith.constant 2 : i32
    %10 = vector.broadcast %c2_i32 : i32 to vector<1x128xi32>
    %11 = arith.cmpi eq, %1, %10 : vector<1x128xi32>
    %12 = vector.extract_strided_slice %2 {offsets = [0, 2], sizes = [32, 1], strides = [1, 1]} : vector<32x4xf32> to vector<32x1xf32>
    %13 = vector.extract_strided_slice %2 {offsets = [0, 3], sizes = [32, 1], strides = [1, 1]} : vector<32x4xf32> to vector<32x1xf32>
    %14 = vector.shape_cast %11 : vector<1x128xi1> to vector<1x128xi1>
    %15 = vector.broadcast %14 : vector<1x128xi1> to vector<32x128xi1>
    %16 = vector.shape_cast %12 : vector<32x1xf32> to vector<32x1xf32>
    %17 = vector.broadcast %16 : vector<32x1xf32> to vector<32x128xf32>
    %18 = vector.shape_cast %13 : vector<32x1xf32> to vector<32x1xf32>
    %19 = vector.broadcast %18 : vector<32x1xf32> to vector<32x128xf32>
    %20 = arith.select %15, %17, %19 : vector<32x128xi1>, vector<32x128xf32>
    %21 = vector.shape_cast %8 : vector<1x128xi1> to vector<1x128xi1>
    %22 = vector.broadcast %21 : vector<1x128xi1> to vector<32x128xi1>
    %23 = vector.shape_cast %9 : vector<32x1xf32> to vector<32x1xf32>
    %24 = vector.broadcast %23 : vector<32x1xf32> to vector<32x128xf32>
    %25 = arith.select %22, %24, %20 : vector<32x128xi1>, vector<32x128xf32>
    %26 = vector.shape_cast %5 : vector<1x128xi1> to vector<1x128xi1>
    %27 = vector.broadcast %26 : vector<1x128xi1> to vector<32x128xi1>
    %28 = vector.shape_cast %6 : vector<32x1xf32> to vector<32x1xf32>
    %29 = vector.broadcast %28 : vector<32x1xf32> to vector<32x128xf32>
    %30 = arith.select %27, %29, %25 : vector<32x128xi1>, vector<32x128xf32>
    %cst = arith.constant 0.000000e+00 : f32
    %31 = vector.broadcast %cst : f32 to vector<32x128xf32>
    %32 = arith.maximumf %30, %31 : vector<32x128xf32>
    %c0_6 = arith.constant 0 : index
    %c0_7 = arith.constant 0 : index
    %33 = vector.load %arg4[%c0_6, %c0_7] : memref<4x32xf32, #tpu.memory_space<vmem>>, vector<4x32xf32>
    %cst_8 = arith.constant dense<0.000000e+00> : vector<4x128xf32>
    %34 = tpu.matmul %33, %32, %cst_8 {dimension_numbers = #tpu.dot_dimension_numbers<[1], [0], [0], [1], [0, 0, 1, 1], [], []>} : vector<4x32xf32>, vector<32x128xf32>, vector<4x128xf32> -> vector<4x128xf32>
    %c0_i32_9 = arith.constant 0 : i32
    %35 = vector.broadcast %c0_i32_9 : i32 to vector<1x128xi32>
    %36 = arith.cmpi eq, %1, %35 : vector<1x128xi32>
    %37 = vector.extract_strided_slice %3 {offsets = [0, 0], sizes = [4, 1], strides = [1, 1]} : vector<4x4xf32> to vector<4x1xf32>
    %c1_i32_10 = arith.constant 1 : i32
    %38 = vector.broadcast %c1_i32_10 : i32 to vector<1x128xi32>
    %39 = arith.cmpi eq, %1, %38 : vector<1x128xi32>
    %40 = vector.extract_strided_slice %3 {offsets = [0, 1], sizes = [4, 1], strides = [1, 1]} : vector<4x4xf32> to vector<4x1xf32>
    %c2_i32_11 = arith.constant 2 : i32
    %41 = vector.broadcast %c2_i32_11 : i32 to vector<1x128xi32>
    %42 = arith.cmpi eq, %1, %41 : vector<1x128xi32>
    %43 = vector.extract_strided_slice %3 {offsets = [0, 2], sizes = [4, 1], strides = [1, 1]} : vector<4x4xf32> to vector<4x1xf32>
    %44 = vector.extract_strided_slice %3 {offsets = [0, 3], sizes = [4, 1], strides = [1, 1]} : vector<4x4xf32> to vector<4x1xf32>
    %45 = vector.shape_cast %42 : vector<1x128xi1> to vector<1x128xi1>
    %46 = vector.broadcast %45 : vector<1x128xi1> to vector<4x128xi1>
    %47 = vector.shape_cast %43 : vector<4x1xf32> to vector<4x1xf32>
    %48 = vector.broadcast %47 : vector<4x1xf32> to vector<4x128xf32>
    %49 = vector.shape_cast %44 : vector<4x1xf32> to vector<4x1xf32>
    %50 = vector.broadcast %49 : vector<4x1xf32> to vector<4x128xf32>
    %51 = arith.select %46, %48, %50 : vector<4x128xi1>, vector<4x128xf32>
    %52 = vector.shape_cast %39 : vector<1x128xi1> to vector<1x128xi1>
    %53 = vector.broadcast %52 : vector<1x128xi1> to vector<4x128xi1>
    %54 = vector.shape_cast %40 : vector<4x1xf32> to vector<4x1xf32>
    %55 = vector.broadcast %54 : vector<4x1xf32> to vector<4x128xf32>
    %56 = arith.select %53, %55, %51 : vector<4x128xi1>, vector<4x128xf32>
    %57 = vector.shape_cast %36 : vector<1x128xi1> to vector<1x128xi1>
    %58 = vector.broadcast %57 : vector<1x128xi1> to vector<4x128xi1>
    %59 = vector.shape_cast %37 : vector<4x1xf32> to vector<4x1xf32>
    %60 = vector.broadcast %59 : vector<4x1xf32> to vector<4x128xf32>
    %61 = arith.select %58, %60, %56 : vector<4x128xi1>, vector<4x128xf32>
    %62 = arith.addf %34, %61 : vector<4x128xf32>
    %c0_12 = arith.constant 0 : index
    %c0_13 = arith.constant 0 : index
    %c0_14 = arith.constant 0 : index
    %63 = vector.load %arg6[%c0_12, %c0_13, %c0_14] : memref<1x4x128xf32, #tpu.memory_space<vmem>>, vector<1x4x128xf32>
    %64 = vector.shape_cast %63 : vector<1x4x128xf32> to vector<4x128xf32>
    %65 = vector.shape_cast %62 : vector<4x128xf32> to vector<1x4x128xf32>
    tpu.vector_store %arg6[%c0_12, %c0_13, %c0_14], %65 {strides = array<i32>} : memref<1x4x128xf32, #tpu.memory_space<vmem>>, vector<1x4x128xf32>,
    return
  }
  func.func @transform_0(%arg0: i32, %arg1: i32) -> (i32, i32, i32) {
    %c0_i32 = arith.constant 0 : i32
    %c0_i32_0 = arith.constant 0 : i32
    return %arg0, %c0_i32, %arg1 : i32, i32, i32
  }
  func.func @transform_1(%arg0: i32, %arg1: i32) -> (i32, i32) {
    %c0_i32 = arith.constant 0 : i32
    %c0_i32_0 = arith.constant 0 : i32
    %c0_i32_1 = arith.constant 0 : i32
    return %c0_i32, %c0_i32_0 : i32, i32
  }
  func.func @transform_2(%arg0: i32, %arg1: i32) -> (i32, i32) {
    %c0_i32 = arith.constant 0 : i32
    %c0_i32_0 = arith.constant 0 : i32
    %c0_i32_1 = arith.constant 0 : i32
    return %c0_i32, %c0_i32_0 : i32, i32
  }
  func.func @transform_3(%arg0: i32, %arg1: i32) -> (i32, i32) {
    %c0_i32 = arith.constant 0 : i32
    %c0_i32_0 = arith.constant 0 : i32
    %c0_i32_1 = arith.constant 0 : i32
    return %c0_i32, %c0_i32_0 : i32, i32
  }
  func.func @transform_4(%arg0: i32, %arg1: i32) -> (i32, i32, i32) {
    %c0_i32 = arith.constant 0 : i32
    %c0_i32_0 = arith.constant 0 : i32
    return %arg0, %c0_i32, %arg1 : i32, i32, i32
  }
}

</mosaic_0001>

<llo_original>
// kernel: splicepoint_branch_site_predictor.1
$region0: #{splicepoint_branch_site_predictor.1}
  #allocation0 [shape = 'u32[]', space=smem, size = 0x4, offset = 0x4, fixed_abs, tag = 'smem constant byte address 0x4 - core index']
  #allocation1 [shape = 'u32[144,128]{1,0:T(1,128)}', space=vmem, size = 0x12000, scoped, tag = 'internal scratch']
  %s0 = inlined_call_operand.vmem [shape: s32[2,1,256], index: 0, kind: input, shape index: {}]
  %s1 = inlined_call_operand.vmem [shape: f32[32,4], index: 1, kind: input, shape index: {}]
  %s2 = inlined_call_operand.vmem [shape: f32[4,32], index: 2, kind: input, shape index: {}]
  %s3 = inlined_call_operand.vmem [shape: f32[4,4], index: 3, kind: input, shape index: {}]
  %s4 = inlined_call_operand.hbm [shape: f32[2,4,256], index: 4, kind: output, shape index: {}]
  %s5 = sld [smem:[#allocation0]]
  $region49: #{splicepoint_branch_site_predictor.1} parent=0
    _
  %s7 = ssub.s32 1, %s5
  %s8 = scalar_select 0, %s7, %s5
  $region1: #{splicepoint_branch_site_predictor.1} parent=0
    #allocation2 [shape = 'u8[4096]{0}', space=vmem, size = 0x1000, scoped, tag = 'output window, operand 0']
    #allocation3 [shape = 's32[2]{0}', space=sflag, size = 0x8, scoped, tag = 'scoped memory for splicepoint_branch_site_predictor.1']
    %9 = vsyncpa [#allocation3], 0
    %s10 = scalar_lea.sflag [#allocation3], 1
    %11 = vsyncpa %s10, 0
    loop: start=0, step=1, limit=6
    $region2: #{splicepoint_branch_site_predictor.1} parent=1 // loop_pre_header
      _
    $region3: #{splicepoint_branch_site_predictor.1} parent=1 // loop_header
      %s13 = sphi 0, %s17
      %p14 = scmp.ge.s32.totalorder %s13, 6
      %s20 = sphi 0, %s32
      %s21 = sphi 0, %s28
      %s22 = sphi 0, %s20
      %s23 = sphi 0, %s21
      %s24 = sphi 0, %s22
      %s25 = sphi 0, %s23
      %s37 = sphi 0, %s39
      %s40 = sphi 0, %s37
      %s41 = sphi 0, %s40
      %s57 = sphi 0, %s41
      %s61 = sphi 0, %s61
      %s63 = sphi 0, %s61
      %s64 = sphi 0, %s63
      %s78 = sphi 0, %s64
      %s82 = sphi 0, %s82
      %s84 = sphi 0, %s82
      %s85 = sphi 0, %s84
      %s99 = sphi 0, %s85
      %s103 = sphi 0, %s103
      %s105 = sphi 0, %s103
      %s106 = sphi 0, %s105
      %s120 = sphi 0, %s106
      %s128 = sphi 0, %s130
      %s131 = sphi 0, %s128
      %s132 = sphi 0, %s131
      %s148 = sphi 0, %s132
    $region4: #{splicepoint_branch_site_predictor.1} parent=1 // loop_header_branch
      %16 = sbr.rel (%p14) target = $region8
    $region5: #{splicepoint_branch_site_predictor.1} parent=1 // loop_body
      %s18 = ssub.s32 %s13, 1
      %s19 = ssub.s32 %s13, 2
      %s26 = sadd.s32 1, %s21
      %p27 = scmp.ge.s32.totalorder %s26, 2
      %s28 = scalar_select %p27, 0, %s26
      %s29 = sadd.s32 1, %s20
      %s30 = scalar_select %p27, %s29, %s20
      %p31 = scmp.ge.s32.totalorder %s30, 2
      %s32 = scalar_select %p31, 0, %s30
      %s33 = ssub.s32 %s20, %s32
      %s34 = ssub.s32 %s21, %s28
      %s35 = sor.u32 %s33, %s34
      %p36 = scmp.eq.s32.totalorder %s35, 0
      %s38 = sadd.s32 %s37, 1
      %s39 = scalar_select %p36, %s37, %s38
      %p42 = pneg %p36
      %p43 = scmp.eq.s32.totalorder %s13, 3
      %p44 = por %p42, %p43
      %p45 = scmp.ne.s32.totalorder %s37, %s40
      %p46 = scmp.eq.s32.totalorder %s13, 0
      %p47 = por %p45, %p46
      %p48 = scmp.ne.s32.totalorder %s37, %s40
      %p49 = scmp.eq.s32.totalorder %s18, 3
      %p50 = por %p48, %p49
      %p51 = scmp.ne.s32.totalorder %s40, %s41
      %p52 = scmp.eq.s32.totalorder %s18, 0
      %p53 = por %p51, %p52
      %p54 = scmp.ne.s32.totalorder %s40, %s41
      %p55 = scmp.eq.s32.totalorder %s19, 3
      %p56 = por %p54, %p55
      %p58 = scmp.ne.s32.totalorder %s41, %s57
      %p59 = scmp.eq.s32.totalorder %s19, 0
      %p60 = por %p58, %p59
      %s62 = sadd.s32 %s61, 1
      %p65 = scmp.eq.s32.totalorder %s13, 3
      %p66 = scmp.ne.s32.totalorder %s61, %s63
      %p67 = scmp.eq.s32.totalorder %s13, 0
      %p68 = por %p66, %p67
      %p69 = scmp.ne.s32.totalorder %s61, %s63
      %p70 = scmp.eq.s32.totalorder %s18, 3
      %p71 = por %p69, %p70
      %p72 = scmp.ne.s32.totalorder %s63, %s64
      %p73 = scmp.eq.s32.totalorder %s18, 0
      %p74 = por %p72, %p73
      %p75 = scmp.ne.s32.totalorder %s63, %s64
      %p76 = scmp.eq.s32.totalorder %s19, 3
      %p77 = por %p75, %p76
      %p79 = scmp.ne.s32.totalorder %s64, %s78
      %p80 = scmp.eq.s32.totalorder %s19, 0
      %p81 = por %p79, %p80
      %s83 = sadd.s32 %s82, 1
      %p86 = scmp.eq.s32.totalorder %s13, 3
      %p87 = scmp.ne.s32.totalorder %s82, %s84
      %p88 = scmp.eq.s32.totalorder %s13, 0
      %p89 = por %p87, %p88
      %p90 = scmp.ne.s32.totalorder %s82, %s84
      %p91 = scmp.eq.s32.totalorder %s18, 3
      %p92 = por %p90, %p91
      %p93 = scmp.ne.s32.totalorder %s84, %s85
      %p94 = scmp.eq.s32.totalorder %s18, 0
      %p95 = por %p93, %p94
      %p96 = scmp.ne.s32.totalorder %s84, %s85
      %p97 = scmp.eq.s32.totalorder %s19, 3
      %p98 = por %p96, %p97
      %p100 = scmp.ne.s32.totalorder %s85, %s99
      %p101 = scmp.eq.s32.totalorder %s19, 0
      %p102 = por %p100, %p101
      %s104 = sadd.s32 %s103, 1
      %p107 = scmp.eq.s32.totalorder %s13, 3
      %p108 = scmp.ne.s32.totalorder %s103, %s105
      %p109 = scmp.eq.s32.totalorder %s13, 0
      %p110 = por %p108, %p109
      %p111 = scmp.ne.s32.totalorder %s103, %s105
      %p112 = scmp.eq.s32.totalorder %s18, 3
      %p113 = por %p111, %p112
      %p114 = scmp.ne.s32.totalorder %s105, %s106
      %p115 = scmp.eq.s32.totalorder %s18, 0
      %p116 = por %p114, %p115
      %p117 = scmp.ne.s32.totalorder %s105, %s106
      %p118 = scmp.eq.s32.totalorder %s19, 3
      %p119 = por %p117, %p118
      %p121 = scmp.ne.s32.totalorder %s106, %s120
      %p122 = scmp.eq.s32.totalorder %s19, 0
      %p123 = por %p121, %p122
      %s124 = ssub.s32 %s20, %s32
      %s125 = ssub.s32 %s21, %s28
      %s126 = sor.u32 %s124, %s125
      %p127 = scmp.eq.s32.totalorder %s126, 0
      %s129 = sadd.s32 %s128, 1
      %s130 = scalar_select %p127, %s128, %s129
      %p133 = pneg %p127
      %p134 = scmp.eq.s32.totalorder %s13, 3
      %p135 = por %p133, %p134
      %p136 = scmp.ne.s32.totalorder %s128, %s131
      %p137 = scmp.eq.s32.totalorder %s13, 0
      %p138 = por %p136, %p137
      %p139 = scmp.ne.s32.totalorder %s128, %s131
      %p140 = scmp.eq.s32.totalorder %s18, 3
      %p141 = por %p139, %p140
      %p142 = scmp.ne.s32.totalorder %s131, %s132
      %p143 = scmp.eq.s32.totalorder %s18, 0
      %p144 = por %p142, %p143
      %p145 = scmp.ne.s32.totalorder %s131, %s132
      %p146 = scmp.eq.s32.totalorder %s19, 3
      %p147 = por %p145, %p146
      %p149 = scmp.ne.s32.totalorder %s132, %s148
      %p150 = scmp.eq.s32.totalorder %s19, 0
      %p151 = por %p149, %p150
      %p152 = scmp.le.s32.totalorder 1, %s13
      %p153 = scmp.lt.s32.totalorder %s13, 5
      %p154 = pnand %p152, %p153
      %p155 = pneg %p154
      // Predicated region
      $region9: #{splicepoint_branch_site_predictor.1} parent=5 // pred_check
        _
      $region10: #{splicepoint_branch_site_predictor.1} parent=5 // pred_check_branch
        %157 = sbr.rel (%p154) target = $region12
      $region11: #{splicepoint_branch_site_predictor.1} parent=5 // pred_region
        %s158 = ssub.s32 %s13, 1
        // Predicated region
        $region13: #{splicepoint_branch_site_predictor.1} parent=11 // pred_check
          %p159 = pneg %p74
        $region14: #{splicepoint_branch_site_predictor.1} parent=11 // pred_check_branch
          %161 = sbr.rel (%p159) target = $region16
        $region15: #{splicepoint_branch_site_predictor.1} parent=11 // pred_region
          _
        $region16: #{splicepoint_branch_site_predictor.1} parent=11 // pred_fallthru
          _
        // Predicated region
        $region17: #{splicepoint_branch_site_predictor.1} parent=11 // pred_check
          %p162 = pneg %p95
        $region18: #{splicepoint_branch_site_predictor.1} parent=11 // pred_check_branch
          %164 = sbr.rel (%p162) target = $region20
        $region19: #{splicepoint_branch_site_predictor.1} parent=11 // pred_region
          _
        $region20: #{splicepoint_branch_site_predictor.1} parent=11 // pred_fallthru
          _
        // Predicated region
        $region21: #{splicepoint_branch_site_predictor.1} parent=11 // pred_check
          %p165 = pneg %p116
        $region22: #{splicepoint_branch_site_predictor.1} parent=11 // pred_check_branch
          %167 = sbr.rel (%p165) target = $region24
        $region23: #{splicepoint_branch_site_predictor.1} parent=11 // pred_region
          _
        $region24: #{splicepoint_branch_site_predictor.1} parent=11 // pred_fallthru
          _
      $region12: #{splicepoint_branch_site_predictor.1} parent=5 // pred_fallthru
        _
      %p168 = scmp.lt.s32.totalorder %s13, 4
      // Predicated region
      $region25: #{splicepoint_branch_site_predictor.1} parent=5 // pred_check
        %p169 = pneg %p168
      $region26: #{splicepoint_branch_site_predictor.1} parent=5 // pred_check_branch
        %171 = sbr.rel (%p169) target = $region28
      $region27: #{splicepoint_branch_site_predictor.1} parent=5 // pred_region
        // Predicated region
        $region29: #{splicepoint_branch_site_predictor.1} parent=27 // pred_check
          %p172 = pneg %p47
        $region30: #{splicepoint_branch_site_predictor.1} parent=27 // pred_check_branch
          %174 = sbr.rel (%p172) target = $region32
        $region31: #{splicepoint_branch_site_predictor.1} parent=27 // pred_region
          %p175 = scmp.lt.s32.totalorder %s20, 1
          %s176 = scalar_select %p175, %s20, 1
          %p177 = scmp.lt.s32.totalorder %s21, 1
          %s178 = scalar_select %p177, %s21, 1
          %s179 = smul.addr %s176, 2
          %s180 = sadd.s32 %s178, %s179
          %s181 = scalar_lea.vmem %s0, %s180
        $region32: #{splicepoint_branch_site_predictor.1} parent=27 // pred_fallthru
          _
      $region28: #{splicepoint_branch_site_predictor.1} parent=5 // pred_fallthru
        _
      %p182 = scmp.le.s32.totalorder 1, %s13
      %p183 = scmp.lt.s32.totalorder %s13, 5
      %p184 = pnand %p182, %p183
      %p185 = pneg %p184
      // Predicated region
      $region33: #{splicepoint_branch_site_predictor.1} parent=5 // pred_check
        _
      $region34: #{splicepoint_branch_site_predictor.1} parent=5 // pred_check_branch
        %187 = sbr.rel (%p184) target = $region36
      $region35: #{splicepoint_branch_site_predictor.1} parent=5 // pred_region
        %s188 = ssub.s32 %s13, 1
        %p189 = scmp.lt.s32.totalorder %s22, 1
        %s190 = scalar_select %p189, %s22, 1
        %p191 = scmp.lt.s32.totalorder %s23, 1
        %s192 = scalar_select %p191, %s23, 1
        %s193 = smul.addr %s190, 2
        %s194 = sadd.s32 %s192, %s193
        %s195 = scalar_lea.vmem %s0, %s194
        %p196 = pneg %p53
        %p197 = pneg %p50
        %p198 = pneg %p74
        %p199 = pneg %p71
        %p200 = pneg %p95
        %p201 = pneg %p92
        %p202 = pneg %p116
        %p203 = pneg %p113
        %p204 = pneg %p144
        %p205 = pneg %p141
        %s206 = sand.u32 %s131, 1
        %s207 = scalar_lea.sflag [#allocation3], %s206
        %s208 = sand.u32 %s131, 1
        %s209 = smul.addr %s208, 4
        %s210 = scalar_lea.vmem [#allocation2], %s209
        %p211 = scmp.lt.s32.totalorder %s22, 1
        %s212 = scalar_select %p211, %s22, 1
        %p213 = scmp.lt.s32.totalorder %s23, 1
        %s214 = scalar_select %p213, %s23, 1
        %s215 = smul.addr %s212, 2
        %s216 = sadd.s32 %s214, %s215
        %s217 = scalar_lea.vmem %s0, %s216
        %v218 = vld [vmem:[%s217] sm:$0x1]
        %v219 = vld [vmem:[%s1] sm:$0xff]
        %v220 = vld [vmem:[%s1 + $0x8] sm:$0xff]
        %v221 = vld [vmem:[%s1 + $0x10] sm:$0xff]
        %v222 = vld [vmem:[%s1 + $0x18] sm:$0xff]
        %v223 = vld [vmem:[%s3] sm:$0xf]
        %vm224 = vcmp.eq.s32.totalorder %v218, 0
        %vm225 = vcmp.eq.s32.totalorder %v218, 1
        %vm226 = vcmp.eq.s32.totalorder %v218, 2
        %v227 = vsel %vm226, 1, 0
        %v228 = vlaneseq
        %v229 = vshrl.u32 %v228, 7
        %v230 = vsub.s32 0, %v229
        %v231 = vrot.slane %v227, %v230
        %vm232 = vcmp.eq.s32.totalorder %v231, 1
        %234 = vset.pattern.permute.xlu0 2
        %235 = vperm.xlu0 %234, %v219
        %v236 = vpop.permute.xlu0 %235
        %239 = vset.pattern.permute.xlu0 2
        %240 = vperm.xlu0 %239, %v220
        %v241 = vpop.permute.xlu0 %240
        %244 = vset.pattern.permute.xlu0 2
        %245 = vperm.xlu0 %244, %v221
        %v246 = vpop.permute.xlu0 %245
        %249 = vset.pattern.permute.xlu0 2
        %250 = vperm.xlu0 %249, %v222
        %v251 = vpop.permute.xlu0 %250
        %253 = vset.pattern.permute.xlu0 3
        %254 = vperm.xlu0 %253, %v219
        %v255 = vpop.permute.xlu0 %254
        %257 = vset.pattern.permute.xlu0 3
        %258 = vperm.xlu0 %257, %v220
        %v259 = vpop.permute.xlu0 %258
        %261 = vset.pattern.permute.xlu0 3
        %262 = vperm.xlu0 %261, %v221
        %v263 = vpop.permute.xlu0 %262
        %265 = vset.pattern.permute.xlu0 3
        %266 = vperm.xlu0 %265, %v222
        %v267 = vpop.permute.xlu0 %266
        %v269 = vsel %vm232, %v236, %v255
        %v270 = vsel %vm232, %v241, %v259
        %v271 = vsel %vm232, %v246, %v263
        %v272 = vsel %vm232, %v251, %v267
        %v273 = vsel %vm225, 1, 0
        %v274 = vlaneseq
        %v275 = vshrl.u32 %v274, 7
        %v276 = vsub.s32 0, %v275
        %v277 = vrot.slane %v273, %v276
        %vm278 = vcmp.eq.s32.totalorder %v277, 1
        %279 = vset.pattern.permute.xlu0 1
        %280 = vperm.xlu0 %279, %v219
        %v281 = vpop.permute.xlu0 %280
        %283 = vset.pattern.permute.xlu0 1
        %284 = vperm.xlu0 %283, %v220
        %v285 = vpop.permute.xlu0 %284
        %287 = vset.pattern.permute.xlu0 1
        %288 = vperm.xlu0 %287, %v221
        %v289 = vpop.permute.xlu0 %288
        %291 = vset.pattern.permute.xlu0 1
        %292 = vperm.xlu0 %291, %v222
        %v293 = vpop.permute.xlu0 %292
        %v295 = vsel %vm278, %v281, %v269
        %v296 = vsel %vm278, %v285, %v270
        %v297 = vsel %vm278, %v289, %v271
        %v298 = vsel %vm278, %v293, %v272
        %v299 = vsel %vm224, 1, 0
        %v300 = vlaneseq
        %v301 = vshrl.u32 %v300, 7
        %v302 = vsub.s32 0, %v301
        %v303 = vrot.slane %v299, %v302
        %vm304 = vcmp.eq.s32.totalorder %v303, 1
        %305 = vset.pattern.permute.xlu0 0
        %306 = vperm.xlu0 %305, %v219
        %v307 = vpop.permute.xlu0 %306
        %309 = vset.pattern.permute.xlu0 0
        %310 = vperm.xlu0 %309, %v220
        %v311 = vpop.permute.xlu0 %310
        %313 = vset.pattern.permute.xlu0 0
        %314 = vperm.xlu0 %313, %v221
        %v315 = vpop.permute.xlu0 %314
        %317 = vset.pattern.permute.xlu0 0
        %318 = vperm.xlu0 %317, %v222
        %v319 = vpop.permute.xlu0 %318
        %v321 = vsel %vm304, %v307, %v295
        %v322 = vsel %vm304, %v311, %v296
        %v323 = vsel %vm304, %v315, %v297
        %v324 = vsel %vm304, %v319, %v298
        %v325 = vmax.f32 %v321, 0.0
        %v326 = vmax.f32 %v322, 0.0
        %v327 = vmax.f32 %v323, 0.0
        %v328 = vmax.f32 %v324, 0.0
        %v329 = vld [vmem:[%s2] sm:$0xf]
        %331 = vset.pattern.permute.xlu0 2
        %332 = vperm.xlu0 %331, %v223
        %v333 = vpop.permute.xlu0 %332
        %335 = vset.pattern.permute.xlu0 3
        %336 = vperm.xlu0 %335, %v223
        %v337 = vpop.permute.xlu0 %336
        %v339 = vsel %vm232, %v333, %v337
        %340 = vset.pattern.permute.xlu0 1
        %341 = vperm.xlu0 %340, %v223
        %v342 = vpop.permute.xlu0 %341
        %v344 = vsel %vm278, %v342, %v339
        %345 = vset.pattern.permute.xlu0 0
        %346 = vperm.xlu0 %345, %v223
        %v347 = vpop.permute.xlu0 %346
        %v349 = vsel %vm304, %v347, %v344
        %vm350 = vcmask 261120
        %v352 = vsel %vm350, %v329, 0
        %354 = vmatprep.subr.mxu0 0.0
        %355 = vmatpush1.msra.mxu0 %v325
        %356 = vmatprep.subr.mxu0 0.0
        %357 = vmatpush1.msra.mxu0 %v326
        %358 = vmatprep.subr.mxu0 0.0
        %359 = vmatpush1.msra.mxu0 %v327
        %360 = vmatprep.subr.mxu0 0.0
        %361 = vmatpush1.msra.mxu0 %v328
        %362 = vmatprep.subr.mxu0 0.0
        %363 = vmatpush1.msra.mxu0 0.0
        %364 = vmatprep.subr.mxu0 0.0
        %365 = vmatpush1.msra.mxu0 0.0
        %366 = vmatprep.subr.mxu0 0.0
        %367 = vmatpush1.msra.mxu0 0.0
        %368 = vmatprep.subr.mxu0 0.0
        %369 = vmatpush1.msra.mxu0 0.0
        %370 = vmatprep.subr.mxu0 0.0
        %371 = vmatpush1.msra.mxu0 0.0
        %372 = vmatprep.subr.mxu0 0.0
        %373 = vmatpush1.msra.mxu0 0.0
        %374 = vmatprep.subr.mxu0 0.0
        %375 = vmatpush1.msra.mxu0 0.0
        %376 = vmatprep.subr.mxu0 0.0
        %377 = vmatpush1.msra.mxu0 0.0
        %378 = vmatprep.subr.mxu0 0.0
        %379 = vmatpush1.msra.mxu0 0.0
        %380 = vmatprep.subr.mxu0 0.0
        %381 = vmatpush1.msra.mxu0 0.0
        %382 = vmatprep.subr.mxu0 0.0
        %383 = vmatpush1.msra.mxu0 0.0
        %384 = vmatprep.subr.mxu0 0.0
        %385 = vmatpush1.msra.mxu0 0.0
        %386 = vmatprep.subr.mxu0 0.0
        %387 = vmatpush1.msra.mxu0 0.0
        %388 = vmatprep.subr.mxu0 0.0
        %389 = vmatpush1.msra.mxu0 0.0
        %390 = vmatprep.subr.mxu0 0.0
        %391 = vmatpush1.msra.mxu0 0.0
        %392 = vmatprep.subr.mxu0 0.0
        %393 = vmatpush1.msra.mxu0 0.0
        %394 = vmatprep.subr.mxu0 0.0
        %395 = vmatpush1.msra.mxu0 0.0
        %396 = vmatprep.subr.mxu0 0.0
        %397 = vmatpush1.msra.mxu0 0.0
        %398 = vmatprep.subr.mxu0 0.0
        %399 = vmatpush1.msra.mxu0 0.0
        %400 = vmatprep.subr.mxu0 0.0
        %401 = vmatpush1.msra.mxu0 0.0
        %402 = vmatprep.subr.mxu0 0.0
        %403 = vmatpush1.msra.mxu0 0.0
        %404 = vmatprep.subr.mxu0 0.0
        %405 = vmatpush1.msra.mxu0 0.0
        %406 = vmatprep.subr.mxu0 0.0
        %407 = vmatpush1.msra.mxu0 0.0
        %408 = vmatprep.subr.mxu0 0.0
        %409 = vmatpush1.msra.mxu0 0.0
        %410 = vmatprep.subr.mxu0 0.0
        %411 = vmatpush1.msra.mxu0 0.0
        %412 = vmatprep.subr.mxu0 0.0
        %413 = vmatpush1.msra.mxu0 0.0
        %414 = vmatprep.subr.mxu0 0.0
        %415 = vmatpush1.msra.mxu0 0.0
        %416 = vmatprep.subr.mxu0 0.0
        %417 = vmatpush1.msra.mxu0 0.0
        %418 = vmatprep.mubr.f32.mxu0 0.0
        %419 = vmatmul.mubr.f32.gmra.mrb[0].mxu0 %v352
        %v420 = vpop.f32.mrb[0].mxu0
        %v421 = vadd.f32 %v349, %v420
        %v422 = vpop.f32.mrb[0].mxu0
        %423 = vdwg.mxu0
        %424 = vst [vmem:[%s210] sm:$0xf] %v421
        %s425 = sand.u32 %s131, 1
        %s426 = scalar_lea.sflag [#allocation3], %s425
        %s427 = sand.u32 %s131, 1
        %s428 = smul.addr %s427, 4
        %s429 = scalar_lea.vmem [#allocation2], %s428
        // Predicated region
        $region37: #{splicepoint_branch_site_predictor.1} parent=35 // pred_check
          %p430 = pneg %p141
        $region38: #{splicepoint_branch_site_predictor.1} parent=35 // pred_check_branch
          %432 = sbr.rel (%p430) target = $region40
        $region39: #{splicepoint_branch_site_predictor.1} parent=35 // pred_region
          %s434 = ssub.s32 64, 64
          %435 = vsyncadd %s426, %s434
          %s436 = smul.addr %s22, 2
          %s437 = sadd.s32 %s23, %s436
          %s438 = smul.addr %s437, 64
          %s439 = scalar_lea.hbm %s4, %s438
          %s441 = sshll.u32 %s429, 4
          %s442 = int_to_ptr.vmem [resolvable:$true] %s441
          %444 = dma.vmem_to_hbm [thread:$0]  %s442, 64, %s439, %s426
        $region40: #{splicepoint_branch_site_predictor.1} parent=35 // pred_fallthru
          _
      $region36: #{splicepoint_branch_site_predictor.1} parent=5 // pred_fallthru
        _
      %p445 = scmp.le.s32.totalorder 2, %s13
      // Predicated region
      $region41: #{splicepoint_branch_site_predictor.1} parent=5 // pred_check
        %p446 = pneg %p445
      $region42: #{splicepoint_branch_site_predictor.1} parent=5 // pred_check_branch
        %448 = sbr.rel (%p446) target = $region44
      $region43: #{splicepoint_branch_site_predictor.1} parent=5 // pred_region
        %s449 = ssub.s32 %s13, 2
        // Predicated region
        $region45: #{splicepoint_branch_site_predictor.1} parent=43 // pred_check
          %p450 = pneg %p147
        $region46: #{splicepoint_branch_site_predictor.1} parent=43 // pred_check_branch
          %452 = sbr.rel (%p450) target = $region48
        $region47: #{splicepoint_branch_site_predictor.1} parent=43 // pred_region
          %s453 = sand.u32 %s132, 1
          %s454 = scalar_lea.sflag [#allocation3], %s453
          %s455 = sand.u32 %s132, 1
          %s456 = smul.addr %s455, 4
          %s457 = scalar_lea.vmem [#allocation2], %s456
          %458 = dma.done %s454, 64
        $region48: #{splicepoint_branch_site_predictor.1} parent=43 // pred_fallthru
          _
      $region44: #{splicepoint_branch_site_predictor.1} parent=5 // pred_fallthru
        _
    $region6: #{splicepoint_branch_site_predictor.1} parent=1 // loop_footer
      %s17 = sadd.s32 1, %s13
    $region7: #{splicepoint_branch_site_predictor.1} parent=1 // loop_footer_branch
      %12 = sbr.rel target = $region3
    $region8: #{splicepoint_branch_site_predictor.1} parent=1 // loop_exit
      _
    %459 = vsyncpa [#allocation3], 1
    %s460 = scalar_lea.sflag [#allocation3], 1
    %461 = vsyncpa %s460, 1

</llo_original>
